<compile_context>
chip_gen: v7x
topology: tpu7x:2x2x1
jax: 0.10.0
libtpu: 0.0.40
codegen_flags: <defaults>
</compile_context>

<pallas_src>
import functools

import jax
import jax.numpy as jnp
from jax.experimental import pallas as pl
from jax.experimental.pallas import tpu as pltpu


def _round_up(x, m):
    return ((x + m - 1) // m) * m


# ----------------------------------------------------------------------------
# Generation-aware VMEM budgeting.
# ----------------------------------------------------------------------------
def _vmem_config():
    cap = None
    try:
        info = pltpu.get_tpu_info()
        cap = getattr(info, "vmem_capacity_bytes", None)
    except Exception:
        cap = None
    if cap is None:
        cap = 64 * 1024 * 1024  # conservative: assume v7x-sized VMEM
    if cap >= 100 * 1024 * 1024:  # v5e / v6e: 128 MiB physical VMEM
        return dict(ce_slab=8 * 1024 * 1024, ce_limit=64 * 1024 * 1024,
                    cov_budget=48 * 1024 * 1024, cov_limit=64 * 1024 * 1024)
    # v7x: 64 MiB physical VMEM per TensorCore
    return dict(ce_slab=4 * 1024 * 1024, ce_limit=32 * 1024 * 1024,
                cov_budget=24 * 1024 * 1024, cov_limit=32 * 1024 * 1024)


# ----------------------------------------------------------------------------
# Kernel 1: token-level cross entropy with ignore_index=0 (flash-LSE over vocab).
# Grid = (row_tiles, vocab_tiles).  Per row-tile partials (loss_sum, valid_count)
# are written lane-dense; the mean is taken in the JAX wrapper.
# ----------------------------------------------------------------------------
def _ce_kernel(logits_ref, tgt_ref, out_ref, m_sc, s_sc, t_sc, *,
               n_rows, tile_rows, v_total, v_tile):
    ri = pl.program_id(0)
    vj = pl.program_id(1)

    @pl.when(vj == 0)
    def _():
        m_sc[...] = jnp.full_like(m_sc, -jnp.inf)
        s_sc[...] = jnp.zeros_like(s_sc)
        t_sc[...] = jnp.zeros_like(t_sc)

    x = logits_ref[...]                      # (TN, Vt) in NATIVE dtype (bf16 stays bf16)
    tgt = tgt_ref[...]                       # (TN, 1) int32

    # Global vocab column ids as a (1, Vt) lane iota; broadcasting vs tgt (TN,1) does
    # the rest (no (TN, Vt) int32 tile).
    col_ids = vj * v_tile + jax.lax.broadcasted_iota(jnp.int32, (1, v_tile), 1)

    if v_total % v_tile != 0:
        # Mask padded vocab columns of the trailing vocab tile.
        col_ok = col_ids < v_total
        x = jnp.where(col_ok, x, jnp.asarray(-jnp.inf, dtype=x.dtype))

    # Max and one-hot select are exact in the native dtype; only exp/accumulate is f32.
    blk_max = jnp.max(x, axis=-1, keepdims=True).astype(jnp.float32)    # (TN, 1)
    m_prev = m_sc[...]
    m_new = jnp.maximum(m_prev, blk_max)

    p = jnp.exp((x - m_new.astype(x.dtype)).astype(jnp.float32))        # (TN, Vt) f32
    s_sc[...] = s_sc[...] * jnp.exp(m_prev - m_new) + jnp.sum(p, axis=-1, keepdims=True)
    m_sc[...] = m_new

    # One-hot target gather (at most one hit per row over the whole vocab -> exact).
    # NOTE: out-of-range targets (tgt >= V) silently contribute 0 (out of contract).
    hit = col_ids == tgt                                                 # (TN, Vt)
    t_sc[...] = t_sc[...] + jnp.sum(
        jnp.where(hit, x, jnp.asarray(0, dtype=x.dtype)),
        axis=-1, keepdims=True).astype(jnp.float32)

    @pl.when(vj == pl.num_programs(1) - 1)
    def _():
        lse = jnp.log(s_sc[...]) + m_sc[...]                             # (TN, 1)
        nll = lse - t_sc[...]                                            # (TN, 1)
        valid = tgt != 0                                                 # ignore_index == 0
        if n_rows % tile_rows != 0:
            row_ids = (ri * tile_rows
                       + jax.lax.broadcasted_iota(jnp.int32, (tile_rows, 1), 0))
            valid = jnp.logical_and(valid, row_ids < n_rows)
        loss_sum = jnp.sum(jnp.where(valid, nll, 0.0))
        count = jnp.sum(valid.astype(jnp.float32))
        lane = jax.lax.broadcasted_iota(jnp.int32, (1, 8, 128), 2)
        out_ref[...] = jnp.where(lane == 0, loss_sum,
                                 jnp.where(lane == 1, count, 0.0))


def _pick_ce_tiles(n, v, slab_budget):
    """Pick (tile_rows, v_tile) so the f32 working slab is ~slab_budget bytes."""
    # Keep the whole vocab in one tile while a >=128-row f32 slab still fits.
    if v <= 2048 or v * 4 * 128 <= slab_budget:
        v_tile = v
    else:
        v_tile = max(128, min(8192, slab_budget // (4 * 128)))
        v_tile = (v_tile // 128) * 128
        if v_tile >= v:
            v_tile = v

    if n <= 8:
        rows = n                      # block == full dim (allowed even if not /8)
    else:
        rows = slab_budget // max(1, v_tile * 4)
        rows = max(8, min(1024, (rows // 8) * 8))
        rows = min(rows, _round_up(n, 8))
        # Keep >= 2 row tiles when N is modest so the "parallel" axis can use both
        # TensorCores on v7x (neutral on v5e/v6e).
        rows = min(rows, max(8, _round_up((n + 1) // 2, 8)))
    return rows, v_tile


def cross_entropy_ignore0(logits_2d, targets_2d, cfg):
    """logits_2d: (N, V) any float dtype, targets_2d: (N, 1) int32 -> (loss_sum, count)."""
    n, v = logits_2d.shape
    tile_rows, v_tile = _pick_ce_tiles(n, v, cfg["ce_slab"])
    num_row_tiles = pl.cdiv(n, tile_rows)
    num_v_tiles = pl.cdiv(v, v_tile)

    partials = pl.pallas_call(
        functools.partial(_ce_kernel, n_rows=n, tile_rows=tile_rows,
                          v_total=v, v_tile=v_tile),
        out_shape=jax.ShapeDtypeStruct((num_row_tiles, 8, 128), jnp.float32),
        grid_spec=pltpu.PrefetchScalarGridSpec(
            num_scalar_prefetch=0,
            grid=(num_row_tiles, num_v_tiles),
            in_specs=[
                pl.BlockSpec((tile_rows, v_tile), lambda i, j: (i, j)),
                pl.BlockSpec((tile_rows, 1), lambda i, j: (i, 0)),
            ],
            out_specs=pl.BlockSpec((1, 8, 128), lambda i, j: (i, 0, 0)),
            scratch_shapes=[
                pltpu.VMEM((tile_rows, 1), jnp.float32),   # running max
                pltpu.VMEM((tile_rows, 1), jnp.float32),   # running sum-exp
                pltpu.VMEM((tile_rows, 1), jnp.float32),   # target logit
            ],
        ),
        compiler_params=pltpu.CompilerParams(
            dimension_semantics=("parallel", "arbitrary"),
            vmem_limit_bytes=cfg["ce_limit"],
        ),
    )(logits_2d, targets_2d)
    loss_sum = jnp.sum(partials[:, 0, 0])
    count = jnp.sum(partials[:, 0, 1])
    return loss_sum, count


# ----------------------------------------------------------------------------
# Kernel 2: coverage penalty.
#   total_attention[b, s] = sum_l sum_t w_l[b, t, s]
#   penalty = sum(min(total_attention, 1))
# L per-layer tensors are L separate inputs (no jnp.stack); grid over
# (B-tiles, T-tiles) with a VMEM running total per batch block; min + sum on the
# last T step; lane-dense per-block partial outputs.
# ----------------------------------------------------------------------------
def _pick_cov_tiles(b, t, s, num_layers, itemsize, budget_bytes):
    # Each of the L inputs is double-buffered -> per-layer slab = budget / (2 * L).
    per_layer = max(1, budget_bytes // (2 * max(1, num_layers)))
    bytes_per_row = s * max(4, itemsize)   # conservative: f32 compute copies
    if t * bytes_per_row <= per_layer:
        t_tile = t
        b_blk = max(1, min(b, per_layer // max(1, t * bytes_per_row)))
    else:
        t_tile = max(8, min(t, (per_layer // bytes_per_row // 8) * 8))
        t_tile = min(t_tile, t)
        b_blk = 1
    return b_blk, t_tile


def _make_coverage_kernel(num_layers, b_total, b_blk, t_total, t_tile):
    def kernel(*refs):
        layer_refs = refs[:num_layers]
        out_ref = refs[num_layers]
        acc_ref = refs[num_layers + 1]       # VMEM (b_blk, S) running total

        bi = pl.program_id(0)
        ti = pl.program_id(1)

        @pl.when(ti == 0)
        def _():
            acc_ref[...] = jnp.zeros_like(acc_ref)

        if t_total % t_tile != 0:
            t_ids = (ti * t_tile
                     + jax.lax.broadcasted_iota(jnp.int32, (1, t_tile, 1), 1))
            t_mask = t_ids < t_total
        else:
            t_mask = None

        total = acc_ref[...]                 # (b_blk, S)
        for lref in layer_refs:
            w = lref[...].astype(jnp.float32)   # (b_blk, t_tile, S)
            if t_mask is not None:
                w = jnp.where(t_mask, w, 0.0)
            total = total + jnp.sum(w, axis=1)  # sum over decoder steps (dim=-2)
        acc_ref[...] = total

        @pl.when(ti == pl.num_programs(1) - 1)
        def _():
            cov = jnp.minimum(acc_ref[...], 1.0)            # (b_blk, S)
            if b_total % b_blk != 0:
                b_ids = (bi * b_blk
                         + jax.lax.broadcasted_iota(jnp.int32, (b_blk, 1), 0))
                cov = jnp.where(b_ids < b_total, cov, 0.0)
            pen = jnp.sum(cov)
            lane = jax.lax.broadcasted_iota(jnp.int32, (1, 8, 128), 2)
            out_ref[...] = jnp.where(lane == 0, pen, 0.0)

    return kernel


def coverage_penalty(attn_layers, cfg):
    """attn_layers: tuple of L arrays, each (B, T, S) -> scalar sum(min(total_attn, 1))."""
    num_layers = len(attn_layers)
    b, t, s = attn_layers[0].shape
    itemsize = jnp.dtype(attn_layers[0].dtype).itemsize
    b_blk, t_tile = _pick_cov_tiles(b, t, s, num_layers, itemsize, cfg["cov_budget"])
    num_b_tiles = pl.cdiv(b, b_blk)
    num_t_tiles = pl.cdiv(t, t_tile)
    # TODO(synk): for very large layer counts (L >= ~8) switch to a layer grid axis
    # (single double-buffered input) so VMEM footprint is independent of L on v7x.

    in_specs = [pl.BlockSpec((b_blk, t_tile, s), lambda bi, ti: (bi, ti, 0))
                for _ in range(num_layers)]
    partials = pl.pallas_call(
        _make_coverage_kernel(num_layers, b, b_blk, t, t_tile),
        out_shape=jax.ShapeDtypeStruct((num_b_tiles, 8, 128), jnp.float32),
        grid_spec=pltpu.PrefetchScalarGridSpec(
            num_scalar_prefetch=0,
            grid=(num_b_tiles, num_t_tiles),
            in_specs=in_specs,
            out_specs=pl.BlockSpec((1, 8, 128), lambda bi, ti: (bi, 0, 0)),
            scratch_shapes=[pltpu.VMEM((b_blk, s), jnp.float32)],
        ),
        compiler_params=pltpu.CompilerParams(
            dimension_semantics=("parallel", "arbitrary"),
            vmem_limit_bytes=cfg["cov_limit"],
        ),
    )(*attn_layers)
    return jnp.sum(partials[:, 0, 0])


# ----------------------------------------------------------------------------
# Wrapper matching CombinedLoss.forward semantics.
# ----------------------------------------------------------------------------
@functools.partial(jax.jit, static_argnames=("lambda_penalty",))
def combined_loss(logits, target, attn_weights=None, *, lambda_penalty=0.1):
    cfg = _vmem_config()
    b, s, v = logits.shape
    # Keep logits in their native dtype (e.g. bf16) — HBM traffic into the CE kernel
    # is never widened by a wrapper-level f32 copy.
    logits_2d = logits.reshape(b * s, v)
    targets_2d = target.reshape(b * s, 1).astype(jnp.int32)

    loss_sum, count = cross_entropy_ignore0(logits_2d, targets_2d, cfg)
    # nn.CrossEntropyLoss(reduction='mean', ignore_index=0): mean over non-ignored
    # tokens (NaN if every token is ignored — same as the PyTorch module).
    total = loss_sum / count

    if attn_weights is not None:
        total = total + jnp.float32(lambda_penalty) * coverage_penalty(tuple(attn_weights), cfg)
    return total


# ----------------------------------------------------------------------------
# Pure-JAX reference for sanity checking.
# ----------------------------------------------------------------------------
def combined_loss_ref(logits, target, attn_list, lambda_penalty=0.1):
    b, s, v = logits.shape
    lg = logits.reshape(-1, v).astype(jnp.float32)
    tg = target.reshape(-1)
    logp = jax.nn.log_softmax(lg, axis=-1)
    nll = -jnp.take_along_axis(logp, tg[:, None], axis=-1)[:, 0]
    valid = (tg != 0).astype(jnp.float32)
    ce = jnp.sum(nll * valid) / jnp.sum(valid)
    total = jnp.sum(jnp.stack([w.sum(axis=-2) for w in attn_list], axis=0), axis=0)
    pen = jnp.sum(jnp.minimum(total, jnp.ones_like(total)))
    return ce + lambda_penalty * pen


if __name__ == "__main__":
    key = jax.random.PRNGKey(0)
    k1, k2, k3, k4 = jax.random.split(key, 4)

    B, S, V = 2, 8, 32            # batch, seq, vocab
    L, T_DEC, S_SRC = 2, 8, 16    # attention layers, decoder len, source len

    logits = jax.random.normal(k1, (B, S, V), dtype=jnp.float32)
    target = jax.random.randint(k2, (B, S), 0, V, dtype=jnp.int32)  # 0 == ignore_index

    attn_list = [
        jax.nn.softmax(jax.random.normal(k3, (B, T_DEC, S_SRC), dtype=jnp.float32), axis=-1),
        jax.nn.softmax(jax.random.normal(k4, (B, T_DEC, S_SRC), dtype=jnp.float32), axis=-1),
    ]

    out = combined_loss(logits, target, attn_list, lambda_penalty=0.1)
    out = jax.block_until_ready(out)

    ref = combined_loss_ref(logits, target, attn_list, lambda_penalty=0.1)
    assert jnp.allclose(out, ref, rtol=1e-4, atol=1e-4), (out, ref)

    print("KERNEL_OK")
</pallas_src>

<mosaic_0001>
module attributes {stable_mosaic.version = 11 : i64} {
  func.func @_ce_kernel(%arg0: i32, %arg1: i32, %arg2: memref<8x32xf32, #tpu.memory_space<vmem>>, %arg3: memref<8x1xi32, #tpu.memory_space<vmem>>, %arg4: memref<1x8x128xf32, #tpu.memory_space<vmem>>, %arg5: memref<8x1xf32, #tpu.memory_space<vmem>>, %arg6: memref<8x1xf32, #tpu.memory_space<vmem>>, %arg7: memref<8x1xf32, #tpu.memory_space<vmem>>) attributes {dimension_semantics = [#tpu.dimension_semantics<parallel>, #tpu.dimension_semantics<arbitrary>], iteration_bounds = array<i64: 2, 1>, scalar_prefetch = 0 : i64, scratch_operands = 3 : i64, tpu.core_type = #tpu.core_type<tc>, window_params = [{transform_indices = @transform_0, window_bounds = array<i64: 8, 32>}, {transform_indices = @transform_1, window_bounds = array<i64: 8, 1>}, {transform_indices = @transform_2, window_bounds = array<i64: 1, 8, 128>}]} {
    %c0_i32 = arith.constant 0 : i32
    %0 = arith.cmpi eq, %arg1, %c0_i32 : i32
    %1 = arith.extui %0 : i1 to i32
    %c0_i32_0 = arith.constant 0 : i32
    %2 = arith.cmpi ne, %1, %c0_i32_0 : i32
    scf.if %2 {
      %cst_21 = arith.constant 0xFF800000 : f32
      %38 = vector.broadcast %cst_21 : f32 to vector<8x1xf32>
      %c0_22 = arith.constant 0 : index
      %c0_23 = arith.constant 0 : index
      %39 = vector.load %arg5[%c0_22, %c0_23] : memref<8x1xf32, #tpu.memory_space<vmem>>, vector<8x1xf32>
      tpu.vector_store %arg5[%c0_22, %c0_23], %38 {strides = array<i32>} : memref<8x1xf32, #tpu.memory_space<vmem>>, vector<8x1xf32>,
      %cst_24 = arith.constant 0.000000e+00 : f32
      %40 = vector.broadcast %cst_24 : f32 to vector<8x1xf32>
      %c0_25 = arith.constant 0 : index
      %c0_26 = arith.constant 0 : index
      %41 = vector.load %arg6[%c0_25, %c0_26] : memref<8x1xf32, #tpu.memory_space<vmem>>, vector<8x1xf32>
      tpu.vector_store %arg6[%c0_25, %c0_26], %40 {strides = array<i32>} : memref<8x1xf32, #tpu.memory_space<vmem>>, vector<8x1xf32>,
      %cst_27 = arith.constant 0.000000e+00 : f32
      %42 = vector.broadcast %cst_27 : f32 to vector<8x1xf32>
      %c0_28 = arith.constant 0 : index
      %c0_29 = arith.constant 0 : index
      %43 = vector.load %arg7[%c0_28, %c0_29] : memref<8x1xf32, #tpu.memory_space<vmem>>, vector<8x1xf32>
      tpu.vector_store %arg7[%c0_28, %c0_29], %42 {strides = array<i32>} : memref<8x1xf32, #tpu.memory_space<vmem>>, vector<8x1xf32>,
    } else {
    }
    %c0 = arith.constant 0 : index
    %c0_1 = arith.constant 0 : index
    %3 = vector.load %arg2[%c0, %c0_1] : memref<8x32xf32, #tpu.memory_space<vmem>>, vector<8x32xf32>
    %c0_2 = arith.constant 0 : index
    %c0_3 = arith.constant 0 : index
    %4 = vector.load %arg3[%c0_2, %c0_3] : memref<8x1xi32, #tpu.memory_space<vmem>>, vector<8x1xi32>
    %c32_i32 = arith.constant 32 : i32
    %5 = arith.muli %arg1, %c32_i32 : i32
    %6 = tpu.iota {dimensions = array<i32: 1>} : vector<1x32xi32>
    %7 = vector.broadcast %5 : i32 to vector<1x32xi32>
    %8 = arith.addi %7, %6 : vector<1x32xi32>
    %cst = arith.constant dense<0xFF800000> : vector<8xf32>
    %9 = vector.multi_reduction <maximumf>, %3, %cst [1] : vector<8x32xf32> to vector<8xf32>
    %10 = vector.shape_cast %9 : vector<8xf32> to vector<8x1xf32>
    %c0_4 = arith.constant 0 : index
    %c0_5 = arith.constant 0 : index
    %11 = vector.load %arg5[%c0_4, %c0_5] : memref<8x1xf32, #tpu.memory_space<vmem>>, vector<8x1xf32>
    %12 = arith.maximumf %11, %10 : vector<8x1xf32>
    %13 = vector.broadcast %12 : vector<8x1xf32> to vector<8x32xf32>
    %14 = arith.subf %3, %13 : vector<8x32xf32>
    %15 = math.exp %14 : vector<8x32xf32>
    %c0_6 = arith.constant 0 : index
    %c0_7 = arith.constant 0 : index
    %16 = vector.load %arg6[%c0_6, %c0_7] : memref<8x1xf32, #tpu.memory_space<vmem>>, vector<8x1xf32>
    %17 = arith.subf %11, %12 : vector<8x1xf32>
    %18 = math.exp %17 : vector<8x1xf32>
    %19 = arith.mulf %16, %18 : vector<8x1xf32>
    %cst_8 = arith.constant dense<0.000000e+00> : vector<8xf32>
    %20 = vector.multi_reduction <add>, %15, %cst_8 [1] : vector<8x32xf32> to vector<8xf32>
    %21 = vector.shape_cast %20 : vector<8xf32> to vector<8x1xf32>
    %22 = arith.addf %19, %21 : vector<8x1xf32>
    %c0_9 = arith.constant 0 : index
    %c0_10 = arith.constant 0 : index
    %23 = vector.load %arg6[%c0_9, %c0_10] : memref<8x1xf32, #tpu.memory_space<vmem>>, vector<8x1xf32>
    tpu.vector_store %arg6[%c0_9, %c0_10], %22 {strides = array<i32>} : memref<8x1xf32, #tpu.memory_space<vmem>>, vector<8x1xf32>,
    %c0_11 = arith.constant 0 : index
    %c0_12 = arith.constant 0 : index
    %24 = vector.load %arg5[%c0_11, %c0_12] : memref<8x1xf32, #tpu.memory_space<vmem>>, vector<8x1xf32>
    tpu.vector_store %arg5[%c0_11, %c0_12], %12 {strides = array<i32>} : memref<8x1xf32, #tpu.memory_space<vmem>>, vector<8x1xf32>,
    %25 = vector.broadcast %8 : vector<1x32xi32> to vector<8x32xi32>
    %26 = vector.broadcast %4 : vector<8x1xi32> to vector<8x32xi32>
    %27 = arith.cmpi eq, %25, %26 : vector<8x32xi32>
    %c0_13 = arith.constant 0 : index
    %c0_14 = arith.constant 0 : index
    %28 = vector.load %arg7[%c0_13, %c0_14] : memref<8x1xf32, #tpu.memory_space<vmem>>, vector<8x1xf32>
    %cst_15 = arith.constant 0.000000e+00 : f32
    %29 = vector.broadcast %cst_15 : f32 to vector<8x32xf32>
    %30 = arith.select %27, %3, %29 : vector<8x32xi1>, vector<8x32xf32>
    %cst_16 = arith.constant dense<0.000000e+00> : vector<8xf32>
    %31 = vector.multi_reduction <add>, %30, %cst_16 [1] : vector<8x32xf32> to vector<8xf32>
    %32 = vector.shape_cast %31 : vector<8xf32> to vector<8x1xf32>
    %33 = arith.addf %28, %32 : vector<8x1xf32>
    %c0_17 = arith.constant 0 : index
    %c0_18 = arith.constant 0 : index
    %34 = vector.load %arg7[%c0_17, %c0_18] : memref<8x1xf32, #tpu.memory_space<vmem>>, vector<8x1xf32>
    tpu.vector_store %arg7[%c0_17, %c0_18], %33 {strides = array<i32>} : memref<8x1xf32, #tpu.memory_space<vmem>>, vector<8x1xf32>,
    %c0_i32_19 = arith.constant 0 : i32
    %35 = arith.cmpi eq, %arg1, %c0_i32_19 : i32
    %36 = arith.extui %35 : i1 to i32
    %c0_i32_20 = arith.constant 0 : i32
    %37 = arith.cmpi ne, %36, %c0_i32_20 : i32
    scf.if %37 {
      %c0_21 = arith.constant 0 : index
      %c0_22 = arith.constant 0 : index
      %38 = vector.load %arg6[%c0_21, %c0_22] : memref<8x1xf32, #tpu.memory_space<vmem>>, vector<8x1xf32>
      %39 = math.log %38 : vector<8x1xf32>
      %c0_23 = arith.constant 0 : index
      %c0_24 = arith.constant 0 : index
      %40 = vector.load %arg5[%c0_23, %c0_24] : memref<8x1xf32, #tpu.memory_space<vmem>>, vector<8x1xf32>
      %41 = arith.addf %39, %40 : vector<8x1xf32>
      %c0_25 = arith.constant 0 : index
      %c0_26 = arith.constant 0 : index
      %42 = vector.load %arg7[%c0_25, %c0_26] : memref<8x1xf32, #tpu.memory_space<vmem>>, vector<8x1xf32>
      %43 = arith.subf %41, %42 : vector<8x1xf32>
      %c0_i32_27 = arith.constant 0 : i32
      %44 = vector.broadcast %c0_i32_27 : i32 to vector<8x1xi32>
      %45 = arith.cmpi ne, %4, %44 : vector<8x1xi32>
      %cst_28 = arith.constant 0.000000e+00 : f32
      %46 = vector.broadcast %cst_28 : f32 to vector<8x1xf32>
      %47 = arith.select %45, %43, %46 : vector<8x1xi1>, vector<8x1xf32>
      %48 = vector.shape_cast %47 : vector<8x1xf32> to vector<1x8x1xf32>
      %cst_29 = arith.constant dense<0.000000e+00> : vector<1xf32>
      %49 = vector.multi_reduction <add>, %48, %cst_29 [1, 2] : vector<1x8x1xf32> to vector<1xf32>
      %50 = vector.shape_cast %49 : vector<1xf32> to vector<1x1x1xf32>
      %51 = vector.extract %50[0, 0, 0] : f32 from vector<1x1x1xf32>
      %52 = arith.extui %45 : vector<8x1xi1> to vector<8x1xi32>
      %53 = arith.sitofp %52 : vector<8x1xi32> to vector<8x1xf32>
      %54 = vector.shape_cast %53 : vector<8x1xf32> to vector<1x8x1xf32>
      %cst_30 = arith.constant dense<0.000000e+00> : vector<1xf32>
      %55 = vector.multi_reduction <add>, %54, %cst_30 [1, 2] : vector<1x8x1xf32> to vector<1xf32>
      %56 = vector.shape_cast %55 : vector<1xf32> to vector<1x1x1xf32>
      %57 = vector.extract %56[0, 0, 0] : f32 from vector<1x1x1xf32>
      %58 = tpu.iota {dimensions = array<i32: 2>} : vector<1x8x128xi32>
      %c0_i32_31 = arith.constant 0 : i32
      %59 = vector.broadcast %c0_i32_31 : i32 to vector<1x8x128xi32>
      %60 = arith.cmpi eq, %58, %59 : vector<1x8x128xi32>
      %c1_i32 = arith.constant 1 : i32
      %61 = vector.broadcast %c1_i32 : i32 to vector<1x8x128xi32>
      %62 = arith.cmpi eq, %58, %61 : vector<1x8x128xi32>
      %cst_32 = arith.constant 0.000000e+00 : f32
      %63 = vector.broadcast %57 : f32 to vector<1x8x128xf32>
      %64 = vector.broadcast %cst_32 : f32 to vector<1x8x128xf32>
      %65 = arith.select %62, %63, %64 : vector<1x8x128xi1>, vector<1x8x128xf32>
      %66 = vector.broadcast %51 : f32 to vector<1x8x128xf32>
      %67 = arith.select %60, %66, %65 : vector<1x8x128xi1>, vector<1x8x128xf32>
      %c0_33 = arith.constant 0 : index
      %c0_34 = arith.constant 0 : index
      %c0_35 = arith.constant 0 : index
      %68 = vector.load %arg4[%c0_33, %c0_34, %c0_35] : memref<1x8x128xf32, #tpu.memory_space<vmem>>, vector<1x8x128xf32>
      tpu.vector_store %arg4[%c0_33, %c0_34, %c0_35], %67 {strides = array<i32>} : memref<1x8x128xf32, #tpu.memory_space<vmem>>, vector<1x8x128xf32>,
    } else {
    }
    return
  }
  func.func @transform_0(%arg0: i32, %arg1: i32) -> (i32, i32) {
    %c0_i32 = arith.constant 0 : i32
    return %arg0, %arg1 : i32, i32
  }
  func.func @transform_1(%arg0: i32, %arg1: i32) -> (i32, i32) {
    %c0_i32 = arith.constant 0 : i32
    %c0_i32_0 = arith.constant 0 : i32
    return %arg0, %c0_i32 : i32, i32
  }
  func.func @transform_2(%arg0: i32, %arg1: i32) -> (i32, i32, i32) {
    %c0_i32 = arith.constant 0 : i32
    %c0_i32_0 = arith.constant 0 : i32
    %c0_i32_1 = arith.constant 0 : i32
    return %arg0, %c0_i32, %c0_i32_0 : i32, i32, i32
  }
}

module attributes {stable_mosaic.version = 11 : i64} {
  func.func @kernel(%arg0: i32, %arg1: i32, %arg2: memref<2x8x16xf32, #tpu.memory_space<vmem>>, %arg3: memref<2x8x16xf32, #tpu.memory_space<vmem>>, %arg4: memref<1x8x128xf32, #tpu.memory_space<vmem>>, %arg5: memref<2x16xf32, #tpu.memory_space<vmem>>) attributes {dimension_semantics = [#tpu.dimension_semantics<parallel>, #tpu.dimension_semantics<arbitrary>], iteration_bounds = array<i64: 1, 1>, scalar_prefetch = 0 : i64, scratch_operands = 1 : i64, tpu.core_type = #tpu.core_type<tc>, window_params = [{transform_indices = @transform_0, window_bounds = array<i64: 2, 8, 16>}, {transform_indices = @transform_1, window_bounds = array<i64: 2, 8, 16>}, {transform_indices = @transform_2, window_bounds = array<i64: 1, 8, 128>}]} {
    %c0_i32 = arith.constant 0 : i32
    %0 = arith.cmpi eq, %arg1, %c0_i32 : i32
    %1 = arith.extui %0 : i1 to i32
    %c0_i32_0 = arith.constant 0 : i32
    %2 = arith.cmpi ne, %1, %c0_i32_0 : i32
    scf.if %2 {
      %cst_13 = arith.constant 0.000000e+00 : f32
      %14 = vector.broadcast %cst_13 : f32 to vector<2x16xf32>
      %c0_14 = arith.constant 0 : index
      %c0_15 = arith.constant 0 : index
      %15 = vector.load %arg5[%c0_14, %c0_15] : memref<2x16xf32, #tpu.memory_space<vmem>>, vector<2x16xf32>
      tpu.vector_store %arg5[%c0_14, %c0_15], %14 {strides = array<i32>} : memref<2x16xf32, #tpu.memory_space<vmem>>, vector<2x16xf32>,
    } else {
    }
    %c0 = arith.constant 0 : index
    %c0_1 = arith.constant 0 : index
    %3 = vector.load %arg5[%c0, %c0_1] : memref<2x16xf32, #tpu.memory_space<vmem>>, vector<2x16xf32>
    %c0_2 = arith.constant 0 : index
    %c0_3 = arith.constant 0 : index
    %c0_4 = arith.constant 0 : index
    %4 = vector.load %arg2[%c0_2, %c0_3, %c0_4] : memref<2x8x16xf32, #tpu.memory_space<vmem>>, vector<2x8x16xf32>
    %cst = arith.constant dense<0.000000e+00> : vector<2x16xf32>
    %5 = vector.multi_reduction <add>, %4, %cst [1] : vector<2x8x16xf32> to vector<2x16xf32>
    %6 = arith.addf %3, %5 : vector<2x16xf32>
    %c0_5 = arith.constant 0 : index
    %c0_6 = arith.constant 0 : index
    %c0_7 = arith.constant 0 : index
    %7 = vector.load %arg3[%c0_5, %c0_6, %c0_7] : memref<2x8x16xf32, #tpu.memory_space<vmem>>, vector<2x8x16xf32>
    %cst_8 = arith.constant dense<0.000000e+00> : vector<2x16xf32>
    %8 = vector.multi_reduction <add>, %7, %cst_8 [1] : vector<2x8x16xf32> to vector<2x16xf32>
    %9 = arith.addf %6, %8 : vector<2x16xf32>
    %c0_9 = arith.constant 0 : index
    %c0_10 = arith.constant 0 : index
    %10 = vector.load %arg5[%c0_9, %c0_10] : memref<2x16xf32, #tpu.memory_space<vmem>>, vector<2x16xf32>
    tpu.vector_store %arg5[%c0_9, %c0_10], %9 {strides = array<i32>} : memref<2x16xf32, #tpu.memory_space<vmem>>, vector<2x16xf32>,
    %c0_i32_11 = arith.constant 0 : i32
    %11 = arith.cmpi eq, %arg1, %c0_i32_11 : i32
    %12 = arith.extui %11 : i1 to i32
    %c0_i32_12 = arith.constant 0 : i32
    %13 = arith.cmpi ne, %12, %c0_i32_12 : i32
    scf.if %13 {
      %c0_13 = arith.constant 0 : index
      %c0_14 = arith.constant 0 : index
      %14 = vector.load %arg5[%c0_13, %c0_14] : memref<2x16xf32, #tpu.memory_space<vmem>>, vector<2x16xf32>
      %cst_15 = arith.constant 1.000000e+00 : f32
      %15 = vector.broadcast %cst_15 : f32 to vector<2x16xf32>
      %16 = arith.minimumf %14, %15 : vector<2x16xf32>
      %17 = vector.shape_cast %16 : vector<2x16xf32> to vector<1x2x16xf32>
      %cst_16 = arith.constant dense<0.000000e+00> : vector<1xf32>
      %18 = vector.multi_reduction <add>, %17, %cst_16 [1, 2] : vector<1x2x16xf32> to vector<1xf32>
      %19 = vector.shape_cast %18 : vector<1xf32> to vector<1x1x1xf32>
      %20 = vector.extract %19[0, 0, 0] : f32 from vector<1x1x1xf32>
      %21 = tpu.iota {dimensions = array<i32: 2>} : vector<1x8x128xi32>
      %c0_i32_17 = arith.constant 0 : i32
      %22 = vector.broadcast %c0_i32_17 : i32 to vector<1x8x128xi32>
      %23 = arith.cmpi eq, %21, %22 : vector<1x8x128xi32>
      %cst_18 = arith.constant 0.000000e+00 : f32
      %24 = vector.broadcast %20 : f32 to vector<1x8x128xf32>
      %25 = vector.broadcast %cst_18 : f32 to vector<1x8x128xf32>
      %26 = arith.select %23, %24, %25 : vector<1x8x128xi1>, vector<1x8x128xf32>
      %c0_19 = arith.constant 0 : index
      %c0_20 = arith.constant 0 : index
      %c0_21 = arith.constant 0 : index
      %27 = vector.load %arg4[%c0_19, %c0_20, %c0_21] : memref<1x8x128xf32, #tpu.memory_space<vmem>>, vector<1x8x128xf32>
      tpu.vector_store %arg4[%c0_19, %c0_20, %c0_21], %26 {strides = array<i32>} : memref<1x8x128xf32, #tpu.memory_space<vmem>>, vector<1x8x128xf32>,
    } else {
    }
    return
  }
  func.func @transform_0(%arg0: i32, %arg1: i32) -> (i32, i32, i32) {
    %c0_i32 = arith.constant 0 : i32
    %c0_i32_0 = arith.constant 0 : i32
    return %arg0, %arg1, %c0_i32 : i32, i32, i32
  }
  func.func @transform_1(%arg0: i32, %arg1: i32) -> (i32, i32, i32) {
    %c0_i32 = arith.constant 0 : i32
    %c0_i32_0 = arith.constant 0 : i32
    return %arg0, %arg1, %c0_i32 : i32, i32, i32
  }
  func.func @transform_2(%arg0: i32, %arg1: i32) -> (i32, i32, i32) {
    %c0_i32 = arith.constant 0 : i32
    %c0_i32_0 = arith.constant 0 : i32
    %c0_i32_1 = arith.constant 0 : i32
    return %arg0, %c0_i32, %c0_i32_0 : i32, i32, i32
  }
}

</mosaic_0001>

<llo_original>
// kernel: combined_loss.3
$region0: #{combined_loss.3}
  #allocation0 [shape = 'u32[]', space=smem, size = 0x4, offset = 0x4, fixed_abs, tag = 'smem constant byte address 0x4 - core index']
  #allocation1 [shape = 'u32[144,128]{1,0:T(1,128)}', space=vmem, size = 0x12000, scoped, tag = 'internal scratch']
  #allocation2 [shape = 'f32[2,16]{1,0:T(2,128)}', space=vmem, size = 0x400, scoped, tag = 'scratch operand']
  %s0 = inlined_call_operand.vmem [shape: f32[2,8,16], index: 0, kind: input, shape index: {}]
  %s1 = inlined_call_operand.vmem [shape: f32[2,8,16], index: 1, kind: input, shape index: {}]
  %s2 = inlined_call_operand.vmem [shape: f32[1,8,128], index: 2, kind: output, shape index: {}]
  %s3 = sld [smem:[#allocation0]]
  $region26: #{combined_loss.3} parent=0
    _
  %s5 = ssub.s32 1, %s3
  %s6 = scalar_select 0, %s5, %s3
  // Predicated region
  $region2: #{combined_loss.3} parent=0 // pred_check
    _
  $region3: #{combined_loss.3} parent=0 // pred_check_branch
    %8 = sbr.rel (0) target = $region5
  $region4: #{combined_loss.3} parent=0 // pred_region
    _
  $region5: #{combined_loss.3} parent=0 // pred_fallthru
    _
  // Predicated region
  $region6: #{combined_loss.3} parent=0 // pred_check
    _
  $region7: #{combined_loss.3} parent=0 // pred_check_branch
    %10 = sbr.rel (0) target = $region9
  $region8: #{combined_loss.3} parent=0 // pred_region
    _
  $region9: #{combined_loss.3} parent=0 // pred_fallthru
    _
  %p11 = scmp.eq.s32.totalorder 0, 0
  // Predicated region
  $region10: #{combined_loss.3} parent=0 // pred_check
    %p12 = pneg %p11
  $region11: #{combined_loss.3} parent=0 // pred_check_branch
    %14 = sbr.rel (%p12) target = $region13
  $region12: #{combined_loss.3} parent=0 // pred_region
    %vm15 = vcmask 123904
    %16 = vst.msk [vmem:[#allocation2] sm:$0x3] %vm15, 0.0
  $region13: #{combined_loss.3} parent=0 // pred_fallthru
    _
  %v17 = vld [vmem:[#allocation2] sm:$0x3]
  %v18 = vld [vmem:[%s0] sm:$0xff]
  %v19 = vld [vmem:[%s0 + $0x8] sm:$0xff]
  %vm20 = vcmask 130048
  %v21 = vsel %vm20, %v18, 0.0
  %v22 = vrot.slane %v21, 4
  %v23 = vadd.f32 %v21, %v22
  %v24 = vrot.slane %v23, 2
  %v25 = vadd.f32 %v23, %v24
  %v26 = vrot.slane %v25, 1
  %v27 = vadd.f32 %v25, %v26
  %v28 = vsel %vm20, %v19, 0.0
  %v29 = vrot.slane %v28, 4
  %v30 = vadd.f32 %v28, %v29
  %v31 = vrot.slane %v30, 2
  %v32 = vadd.f32 %v30, %v31
  %v33 = vrot.slane %v32, 1
  %v34 = vadd.f32 %v32, %v33
  %vm37 = vcmask 1041409
  %v38 = vsel %vm37, %v34, %v27
  %v40 = vadd.f32 %v17, %v38
  %v41 = vld [vmem:[%s1] sm:$0xff]
  %v42 = vld [vmem:[%s1 + $0x8] sm:$0xff]
  %v43 = vsel %vm20, %v41, 0.0
  %v44 = vrot.slane %v43, 4
  %v45 = vadd.f32 %v43, %v44
  %v46 = vrot.slane %v45, 2
  %v47 = vadd.f32 %v45, %v46
  %v48 = vrot.slane %v47, 1
  %v49 = vadd.f32 %v47, %v48
  %v50 = vsel %vm20, %v42, 0.0
  %v51 = vrot.slane %v50, 4
  %v52 = vadd.f32 %v50, %v51
  %v53 = vrot.slane %v52, 2
  %v54 = vadd.f32 %v52, %v53
  %v55 = vrot.slane %v54, 1
  %v56 = vadd.f32 %v54, %v55
  %v59 = vsel %vm37, %v56, %v49
  %v61 = vadd.f32 %v40, %v59
  %vm62 = vcmask 123904
  %63 = vst.msk [vmem:[#allocation2] sm:$0x3] %vm62, %v61
  // Predicated region
  $region14: #{combined_loss.3} parent=0 // pred_check
    %p64 = pneg %p11
  $region15: #{combined_loss.3} parent=0 // pred_check_branch
    %66 = sbr.rel (%p64) target = $region17
  $region16: #{combined_loss.3} parent=0 // pred_region
    %v67 = vld [vmem:[#allocation2] sm:$0x3]
    %v68 = vmin.f32 %v67, 1.0
    %v69 = vsel %vm62, %v68, 0.0
    %70 = vadd.xlane.f32.xlu0 %v69
    %v71 = vpop.xlane.xlu0 %70
    %v72 = vrot.slane %v71, 4
    %v73 = vadd.f32 %v71, %v72
    %v74 = vrot.slane %v73, 2
    %v75 = vadd.f32 %v73, %v74
    %v76 = vrot.slane %v75, 1
    %v77 = vadd.f32 %v75, %v76
    %s78 = vtos %v77
    %v79 = vlaneseq
    %v80 = vand.u32 %v79, 127
    %vm81 = vcmp.eq.s32.totalorder %v80, 0
    %v82 = vstv %s78
    %v83 = vsel %vm81, %v82, 0.0
    %84 = vst [vmem:[%s2] sm:$0xff] %v83
  $region17: #{combined_loss.3} parent=0 // pred_fallthru
    _
  // Predicated region
  $region18: #{combined_loss.3} parent=0 // pred_check
    _
  $region19: #{combined_loss.3} parent=0 // pred_check_branch
    %86 = sbr.rel (0) target = $region21
  $region20: #{combined_loss.3} parent=0 // pred_region
    _
  $region21: #{combined_loss.3} parent=0 // pred_fallthru
    _
  // Predicated region
  $region22: #{combined_loss.3} parent=0 // pred_check
    _
  $region23: #{combined_loss.3} parent=0 // pred_check_branch
    %88 = sbr.rel (0) target = $region25
  $region24: #{combined_loss.3} parent=0 // pred_region
    _
  $region25: #{combined_loss.3} parent=0 // pred_fallthru
    _

// kernel: combined_loss.2
$region0: #{combined_loss.2}
  #allocation0 [shape = 'u32[]', space=smem, size = 0x4, offset = 0x4, fixed_abs, tag = 'smem constant byte address 0x4 - core index']
  #allocation1 [shape = 'u32[144,128]{1,0:T(1,128)}', space=vmem, size = 0x12000, scoped, tag = 'internal scratch']
  #allocation2 [shape = 'f32[8,1]{1,0:T(8,128)}', space=vmem, size = 0x1000, scoped, tag = 'scratch operand']
  #allocation3 [shape = 'f32[8,1]{1,0:T(8,128)}', space=vmem, size = 0x1000, scoped, tag = 'scratch operand']
  #allocation4 [shape = 'f32[8,1]{1,0:T(8,128)}', space=vmem, size = 0x1000, scoped, tag = 'scratch operand']
  %s0 = inlined_call_operand.vmem [shape: f32[16,32], index: 0, kind: input, shape index: {}]
  %s1 = inlined_call_operand.vmem [shape: s32[16,1], index: 1, kind: input, shape index: {}]
  %s2 = inlined_call_operand.vmem [shape: f32[2,8,128], index: 2, kind: output, shape index: {}]
  %s3 = sld [smem:[#allocation0]]
  $region49: #{combined_loss.2} parent=0
    _
  %s5 = ssub.s32 1, %s3
  %s6 = scalar_select 0, %s5, %s3
  loop: start=0, step=1, limit=4
  $region2: #{combined_loss.2} parent=0 // loop_pre_header
    _
  $region3: #{combined_loss.2} parent=0 // loop_header
    %s8 = sphi 0, %s12
    %p9 = scmp.ge.s32.totalorder %s8, 4
    %s15 = sphi 0, %s27
    %s16 = sphi 0, %s23
    %s17 = sphi 0, %s15
    %s18 = sphi 0, %s16
    %s19 = sphi 0, %s17
    %s20 = sphi 0, %s18
    %s32 = sphi 0, %s34
    %s35 = sphi 0, %s32
    %s36 = sphi 0, %s35
    %s52 = sphi 0, %s36
    %s58 = sphi 0, %s60
    %s61 = sphi 0, %s58
    %s62 = sphi 0, %s61
    %s78 = sphi 0, %s62
    %s84 = sphi 0, %s86
    %s87 = sphi 0, %s84
    %s88 = sphi 0, %s87
    %s104 = sphi 0, %s88
  $region4: #{combined_loss.2} parent=0 // loop_header_branch
    %11 = sbr.rel (%p9) target = $region8
  $region5: #{combined_loss.2} parent=0 // loop_body
    %s13 = ssub.s32 %s8, 1
    %s14 = ssub.s32 %s8, 2
    %s21 = sadd.s32 1, %s16
    %p22 = scmp.ge.s32.totalorder %s21, 1
    %s23 = scalar_select %p22, 0, %s21
    %s24 = sadd.s32 1, %s15
    %s25 = scalar_select %p22, %s24, %s15
    %p26 = scmp.ge.s32.totalorder %s25, 2
    %s27 = scalar_select %p26, 0, %s25
    %s28 = ssub.s32 %s15, %s27
    %s29 = ssub.s32 %s16, %s23
    %s30 = sor.u32 %s28, %s29
    %p31 = scmp.eq.s32.totalorder %s30, 0
    %s33 = sadd.s32 %s32, 1
    %s34 = scalar_select %p31, %s32, %s33
    %p37 = pneg %p31
    %p38 = scmp.eq.s32.totalorder %s8, 1
    %p39 = por %p37, %p38
    %p40 = scmp.ne.s32.totalorder %s32, %s35
    %p41 = scmp.eq.s32.totalorder %s8, 0
    %p42 = por %p40, %p41
    %p43 = scmp.ne.s32.totalorder %s32, %s35
    %p44 = scmp.eq.s32.totalorder %s13, 1
    %p45 = por %p43, %p44
    %p46 = scmp.ne.s32.totalorder %s35, %s36
    %p47 = scmp.eq.s32.totalorder %s13, 0
    %p48 = por %p46, %p47
    %p49 = scmp.ne.s32.totalorder %s35, %s36
    %p50 = scmp.eq.s32.totalorder %s14, 1
    %p51 = por %p49, %p50
    %p53 = scmp.ne.s32.totalorder %s36, %s52
    %p54 = scmp.eq.s32.totalorder %s14, 0
    %p55 = por %p53, %p54
    %s56 = ssub.s32 %s15, %s27
    %p57 = scmp.eq.s32.totalorder %s56, 0
    %s59 = sadd.s32 %s58, 1
    %s60 = scalar_select %p57, %s58, %s59
    %p63 = pneg %p57
    %p64 = scmp.eq.s32.totalorder %s8, 1
    %p65 = por %p63, %p64
    %p66 = scmp.ne.s32.totalorder %s58, %s61
    %p67 = scmp.eq.s32.totalorder %s8, 0
    %p68 = por %p66, %p67
    %p69 = scmp.ne.s32.totalorder %s58, %s61
    %p70 = scmp.eq.s32.totalorder %s13, 1
    %p71 = por %p69, %p70
    %p72 = scmp.ne.s32.totalorder %s61, %s62
    %p73 = scmp.eq.s32.totalorder %s13, 0
    %p74 = por %p72, %p73
    %p75 = scmp.ne.s32.totalorder %s61, %s62
    %p76 = scmp.eq.s32.totalorder %s14, 1
    %p77 = por %p75, %p76
    %p79 = scmp.ne.s32.totalorder %s62, %s78
    %p80 = scmp.eq.s32.totalorder %s14, 0
    %p81 = por %p79, %p80
    %s82 = ssub.s32 %s15, %s27
    %p83 = scmp.eq.s32.totalorder %s82, 0
    %s85 = sadd.s32 %s84, 1
    %s86 = scalar_select %p83, %s84, %s85
    %p89 = pneg %p83
    %p90 = scmp.eq.s32.totalorder %s8, 1
    %p91 = por %p89, %p90
    %p92 = scmp.ne.s32.totalorder %s84, %s87
    %p93 = scmp.eq.s32.totalorder %s8, 0
    %p94 = por %p92, %p93
    %p95 = scmp.ne.s32.totalorder %s84, %s87
    %p96 = scmp.eq.s32.totalorder %s13, 1
    %p97 = por %p95, %p96
    %p98 = scmp.ne.s32.totalorder %s87, %s88
    %p99 = scmp.eq.s32.totalorder %s13, 0
    %p100 = por %p98, %p99
    %p101 = scmp.ne.s32.totalorder %s87, %s88
    %p102 = scmp.eq.s32.totalorder %s14, 1
    %p103 = por %p101, %p102
    %p105 = scmp.ne.s32.totalorder %s88, %s104
    %p106 = scmp.eq.s32.totalorder %s14, 0
    %p107 = por %p105, %p106
    %p108 = scmp.le.s32.totalorder 1, %s8
    %p109 = scmp.lt.s32.totalorder %s8, 3
    %p110 = pnand %p108, %p109
    %p111 = pneg %p110
    // Predicated region
    $region9: #{combined_loss.2} parent=5 // pred_check
      _
    $region10: #{combined_loss.2} parent=5 // pred_check_branch
      %113 = sbr.rel (%p110) target = $region12
    $region11: #{combined_loss.2} parent=5 // pred_region
      %s114 = ssub.s32 %s8, 1
    $region12: #{combined_loss.2} parent=5 // pred_fallthru
      _
    %p115 = scmp.lt.s32.totalorder %s8, 2
    // Predicated region
    $region13: #{combined_loss.2} parent=5 // pred_check
      %p116 = pneg %p115
    $region14: #{combined_loss.2} parent=5 // pred_check_branch
      %118 = sbr.rel (%p116) target = $region16
    $region15: #{combined_loss.2} parent=5 // pred_region
      // Predicated region
      $region17: #{combined_loss.2} parent=15 // pred_check
        %p119 = pneg %p42
      $region18: #{combined_loss.2} parent=15 // pred_check_branch
        %121 = sbr.rel (%p119) target = $region20
      $region19: #{combined_loss.2} parent=15 // pred_region
        %p122 = scmp.lt.s32.totalorder %s15, 1
        %s123 = scalar_select %p122, %s15, 1
        %p124 = scmp.lt.s32.totalorder %s16, 0
        %s125 = scalar_select %p124, %s16, 0
        %s126 = sadd.s32 %s125, %s123
        %s127 = smul.addr %s126, 8
        %s128 = scalar_lea.vmem %s0, %s127
      $region20: #{combined_loss.2} parent=15 // pred_fallthru
        _
      // Predicated region
      $region21: #{combined_loss.2} parent=15 // pred_check
        %p129 = pneg %p68
      $region22: #{combined_loss.2} parent=15 // pred_check_branch
        %131 = sbr.rel (%p129) target = $region24
      $region23: #{combined_loss.2} parent=15 // pred_region
        %p132 = scmp.lt.s32.totalorder %s15, 1
        %s133 = scalar_select %p132, %s15, 1
        %s134 = smul.addr %s133, 8
        %s135 = scalar_lea.vmem %s1, %s134
      $region24: #{combined_loss.2} parent=15 // pred_fallthru
        _
    $region16: #{combined_loss.2} parent=5 // pred_fallthru
      _
    %p136 = scmp.le.s32.totalorder 1, %s8
    %p137 = scmp.lt.s32.totalorder %s8, 3
    %p138 = pnand %p136, %p137
    %p139 = pneg %p138
    // Predicated region
    $region25: #{combined_loss.2} parent=5 // pred_check
      _
    $region26: #{combined_loss.2} parent=5 // pred_check_branch
      %141 = sbr.rel (%p138) target = $region28
    $region27: #{combined_loss.2} parent=5 // pred_region
      %s142 = ssub.s32 %s8, 1
      %p143 = scmp.lt.s32.totalorder %s17, 1
      %s144 = scalar_select %p143, %s17, 1
      %p145 = scmp.lt.s32.totalorder %s18, 0
      %s146 = scalar_select %p145, %s18, 0
      %s147 = sadd.s32 %s146, %s144
      %s148 = smul.addr %s147, 8
      %s149 = scalar_lea.vmem %s0, %s148
      %p150 = pneg %p48
      %p151 = pneg %p45
      %p152 = scmp.lt.s32.totalorder %s17, 1
      %s153 = scalar_select %p152, %s17, 1
      %s154 = smul.addr %s153, 8
      %s155 = scalar_lea.vmem %s1, %s154
      %p156 = pneg %p74
      %p157 = pneg %p71
      %p158 = pneg %p100
      %p159 = pneg %p97
      %p160 = scmp.lt.s32.totalorder %s17, 1
      %s161 = scalar_select %p160, %s17, 1
      %s162 = smul.addr %s161, 8
      %s163 = scalar_lea.vmem %s2, %s162
      %p164 = scmp.lt.s32.totalorder %s17, 1
      %s165 = scalar_select %p164, %s17, 1
      %p166 = scmp.lt.s32.totalorder %s18, 0
      %s167 = scalar_select %p166, %s18, 0
      %s168 = sadd.s32 %s167, %s165
      %s169 = smul.addr %s168, 8
      %s170 = scalar_lea.vmem %s0, %s169
      %p171 = scmp.lt.s32.totalorder %s17, 1
      %s172 = scalar_select %p171, %s17, 1
      %s173 = smul.addr %s172, 8
      %s174 = scalar_lea.vmem %s1, %s173
      %p175 = scmp.lt.s32.totalorder %s17, 1
      %s176 = scalar_select %p175, %s17, 1
      %s177 = smul.addr %s176, 8
      %s178 = scalar_lea.vmem %s2, %s177
      %p179 = scmp.eq.s32.totalorder %s18, 0
      // Predicated region
      $region29: #{combined_loss.2} parent=27 // pred_check
        %p180 = pneg %p179
      $region30: #{combined_loss.2} parent=27 // pred_check_branch
        %182 = sbr.rel (%p180) target = $region32
      $region31: #{combined_loss.2} parent=27 // pred_region
        %vm183 = vcmask 7168
        %184 = vst.msk [vmem:[#allocation2] sm:$0xff] %vm183, -inf
        %185 = vst.msk [vmem:[#allocation3] sm:$0xff] %vm183, 0.0
        %186 = vst.msk [vmem:[#allocation4] sm:$0xff] %vm183, 0.0
      $region32: #{combined_loss.2} parent=27 // pred_fallthru
        _
      %v187 = vld [vmem:[%s170] sm:$0xff]
      %v188 = vld [vmem:[%s174] sm:$0xff]
      %s189 = smul.u32 %s18, 32
      %v190 = vlaneseq
      %v191 = vand.u32 %v190, 127
      %v192 = vstv %s189
      %v193 = vadd.s32 %v192, %v191
      %vm194 = vcmask 261120
      %v195 = vsel %vm194, %v187, -inf
      %196 = vmax.xlane.f32.xlu0 %v195
      %v197 = vpop.xlane.xlu0 %196
      %v198 = vld [vmem:[#allocation2] sm:$0xff]
      %v199 = vmax.f32 %v198, %v197
      %201 = vset.pattern.permute.xlu0 0
      %202 = vperm.xlu0 %201, %v199
      %v203 = vpop.permute.xlu0 %202
      %v205 = vsub.f32 %v187, %v203
      %v206 = vmul.f32 %v205, 1.442695
      %v207 = vpow.pop %v206
      %v208 = vld [vmem:[#allocation3] sm:$0xff]
      %v209 = vsub.f32 %v198, %v199
      %v210 = vmul.f32 %v209, 1.442695
      %v211 = vpow.pop %v210
      %v212 = vmul.f32 %v208, %v211
      %v213 = vsel %vm194, %v207, 0.0
      %214 = vadd.xlane.f32.xlu0 %v213
      %v215 = vpop.xlane.xlu0 %214
      %v216 = vadd.f32 %v212, %v215
      %vm217 = vcmask 7168
      %218 = vst.msk [vmem:[#allocation3] sm:$0xff] %vm217, %v216
      %219 = vst.msk [vmem:[#allocation2] sm:$0xff] %vm217, %v199
      %220 = vset.pattern.permute.xlu0 0
      %221 = vperm.xlu0 %220, %v188
      %v222 = vpop.permute.xlu0 %221
      %vm223 = vcmp.eq.s32.totalorder %v193, %v222
      %v224 = vld [vmem:[#allocation4] sm:$0xff]
      %v225 = vsel %vm223, %v187, 0.0
      %v226 = vsel %vm194, %v225, 0.0
      %227 = vadd.xlane.f32.xlu0 %v226
      %v228 = vpop.xlane.xlu0 %227
      %v229 = vadd.f32 %v224, %v228
      %230 = vst.msk [vmem:[#allocation4] sm:$0xff] %vm217, %v229
      // Predicated region
      $region33: #{combined_loss.2} parent=27 // pred_check
        %p231 = pneg %p179
      $region34: #{combined_loss.2} parent=27 // pred_check_branch
        %233 = sbr.rel (%p231) target = $region36
      $region35: #{combined_loss.2} parent=27 // pred_region
        %v234 = vld [vmem:[#allocation3] sm:$0xff]
        %v235 = vlog2.pop %v234
        %v236 = vmul.f32 %v235, 0.6931472
        %v237 = vld [vmem:[#allocation2] sm:$0xff]
        %v238 = vadd.f32 %v236, %v237
        %v239 = vld [vmem:[#allocation4] sm:$0xff]
        %v240 = vsub.f32 %v238, %v239
        %vm241 = vcmp.ne.s32.totalorder %v188, 0
        %v242 = vsel %vm241, %v240, 0.0
        %v243 = vsel %vm217, %v242, 0.0
        %244 = vadd.xlane.f32.xlu0 %v243
        %v245 = vpop.xlane.xlu0 %244
        %v246 = vrot.slane %v245, 4
        %v247 = vadd.f32 %v245, %v246
        %v248 = vrot.slane %v247, 2
        %v249 = vadd.f32 %v247, %v248
        %v250 = vrot.slane %v249, 1
        %v251 = vadd.f32 %v249, %v250
        %s252 = vtos %v251
        %v253 = vsel %vm241, 1, 0
        %v254 = vcvt.s32.f32 %v253
        %v255 = vsel %vm217, %v254, 0.0
        %256 = vadd.xlane.f32.xlu0 %v255
        %v257 = vpop.xlane.xlu0 %256
        %v258 = vrot.slane %v257, 4
        %v259 = vadd.f32 %v257, %v258
        %v260 = vrot.slane %v259, 2
        %v261 = vadd.f32 %v259, %v260
        %v262 = vrot.slane %v261, 1
        %v263 = vadd.f32 %v261, %v262
        %s264 = vtos %v263
        %vm265 = vcmp.eq.s32.totalorder %v191, 0
        %vm266 = vcmp.eq.s32.totalorder %v191, 1
        %v267 = vstv %s264
        %v268 = vsel %vm266, %v267, 0.0
        %v269 = vstv %s252
        %v270 = vsel %vm265, %v269, %v268
        %271 = vst [vmem:[%s178] sm:$0xff] %v270
      $region36: #{combined_loss.2} parent=27 // pred_fallthru
        _
      %p272 = scmp.lt.s32.totalorder %s17, 1
      %s273 = scalar_select %p272, %s17, 1
      %s274 = smul.addr %s273, 8
      %s275 = scalar_lea.vmem %s2, %s274
      // Predicated region
      $region37: #{combined_loss.2} parent=27 // pred_check
        %p276 = pneg %p97
      $region38: #{combined_loss.2} parent=27 // pred_check_branch
        %278 = sbr.rel (%p276) target = $region40
      $region39: #{combined_loss.2} parent=27 // pred_region
        _
      $region40: #{combined_loss.2} parent=27 // pred_fallthru
        _
    $region28: #{combined_loss.2} parent=5 // pred_fallthru
      _
    %p279 = scmp.le.s32.totalorder 2, %s8
    // Predicated region
    $region41: #{combined_loss.2} parent=5 // pred_check
      %p280 = pneg %p279
    $region42: #{combined_loss.2} parent=5 // pred_check_branch
      %282 = sbr.rel (%p280) target = $region44
    $region43: #{combined_loss.2} parent=5 // pred_region
      %s283 = ssub.s32 %s8, 2
      // Predicated region
      $region45: #{combined_loss.2} parent=43 // pred_check
        %p284 = pneg %p103
      $region46: #{combined_loss.2} parent=43 // pred_check_branch
        %286 = sbr.rel (%p284) target = $region48
      $region47: #{combined_loss.2} parent=43 // pred_region
        %p287 = scmp.lt.s32.totalorder %s19, 1
        %s288 = scalar_select %p287, %s19, 1
        %s289 = smul.addr %s288, 8
        %s290 = scalar_lea.vmem %s2, %s289
      $region48: #{combined_loss.2} parent=43 // pred_fallthru
        _
    $region44: #{combined_loss.2} parent=5 // pred_fallthru
      _
  $region6: #{combined_loss.2} parent=0 // loop_footer
    %s12 = sadd.s32 1, %s8
  $region7: #{combined_loss.2} parent=0 // loop_footer_branch
    %7 = sbr.rel target = $region3
  $region8: #{combined_loss.2} parent=0 // loop_exit
    _

</llo_original>
